<compile_context>
chip_gen: v7x
topology: tpu7x:2x2x1
jax: 0.10.0
libtpu: 0.0.40
codegen_flags: <defaults>
</compile_context>

<pallas_src>
import functools

import jax
import jax.numpy as jnp
from jax import lax
from jax.experimental import pallas as pl
from jax.experimental.pallas import tpu as pltpu


_SPIKE_MODES = ['GS', 'SB', 'TRB', 'D', 'SD', 'TD', 'TRD',
                'T', 'ST', 'TT', 'TRT', 'D2', 'T2']

_LANE = 128                    # lane width: output last dim padded to this
_ROW_ALIGN = 16                # sublane alignment (also safe for bf16 outputs)
_TILE_BYTES = 4 * 1024 * 1024  # per-block f32 budget (fits v7x 64 MiB VMEM w/ 2x buffering)
_VMEM_LIMIT = 32 * 1024 * 1024


def _round_up(v, m):
    return (v + m - 1) // m * m


def _normalize(spike_mode, x):
    """Normalization used by SpikingFunction (pure jnp; used in & out of kernel)."""
    if spike_mode in ('SB', 'SD', 'ST'):
        return jax.nn.sigmoid(x)
    if spike_mode in ('TD', 'TT'):
        return jnp.tanh(x)
    if spike_mode in ('TRB', 'TRD', 'TRT'):
        return jnp.maximum(jnp.tanh(x), 0.0)   # relu(tanh(x))
    return x


def _heaviside(x):
    # SurrogateFunction forward == (x > 0).float()
    return (x > 0).astype(jnp.float32)


# --------------------------- kernels ----------------------------------------

def _flat_det_kernel(spike_mode, thr, x_ref, o_ref):
    """Threshold-style modes on a flattened (rows, lanes) tile."""
    x = _normalize(spike_mode, x_ref[...].astype(jnp.float32))
    if spike_mode in ('T', 'ST', 'TT', 'TRT'):
        out = _heaviside(x - thr)
    else:  # 'T2'
        out = _heaviside(x - thr) - _heaviside(-x - thr)
    o_ref[...] = out.astype(o_ref.dtype)


def _flat_rng_kernel(spike_mode, x_ref, u_ref, o_ref):
    """Stochastic modes (SB / TRB / GS) on a flattened (rows, lanes) tile."""
    x = _normalize(spike_mode, x_ref[...].astype(jnp.float32))
    u = u_ref[...]
    if spike_mode in ('SB', 'TRB'):
        # torch.bernoulli(p): 1 with probability p
        out = (u < x).astype(jnp.float32)
    else:  # 'GS' hard Gumbel-Softmax: y_soft > 0.5  <=>  2x + (g0 - g1) > 0,
           # and g0 - g1 ~ Logistic(0,1) = log(u) - log(1-u). tau > 0 drops out.
        noise = jnp.log(u) - jnp.log(1.0 - u)
        out = _heaviside(2.0 * x + noise)
    o_ref[...] = out.astype(o_ref.dtype)


def _delta_kernel(spike_mode, thr, x_ref, o_ref):
    """Delta modes on a (bB, T, N) tile (whole time axis in the block)."""
    x = _normalize(spike_mode, x_ref[...].astype(jnp.float32))   # (bB, T, N)
    # prev[t] = x[t-1], prev[0] = 0   (roll is XLU work, off the VPU path;
    # the iota+select is cheap filler on a memory-bound kernel)
    prev = pltpu.roll(x, shift=1, axis=1)
    t_idx = lax.broadcasted_iota(jnp.int32, x.shape, 1)
    prev = jnp.where(t_idx == 0, 0.0, prev)
    diff = x - prev
    if spike_mode == 'D2':
        out = _heaviside(diff - thr) - _heaviside(-diff - thr)
    else:  # 'D', 'SD', 'TD', 'TRD'
        out = _heaviside(diff - thr)
    o_ref[...] = out.astype(o_ref.dtype)


# --------------------------- wrapper -----------------------------------------

def _pick_row_tile(n_rows, n_lanes):
    """Row-tile for the flattened path: big (bytes budget) but >=2 grid steps."""
    r_aligned = _round_up(n_rows, _ROW_ALIGN)
    max_rows = max(_ROW_ALIGN,
                   (_TILE_BYTES // (n_lanes * 4)) // _ROW_ALIGN * _ROW_ALIGN)
    tr = min(r_aligned, max_rows)
    if tr == r_aligned and r_aligned > _ROW_ALIGN:
        # split into >=2 blocks so a "parallel" grid can use both v7x TCs
        tr = _round_up(-(-r_aligned // 2), _ROW_ALIGN)
    return tr


def spiking_forward(x, spk_threshold, spike_mode, *, key=None, tau=1.0,
                    out_dtype=jnp.float32):
    """Pallas implementation of SpikingFunction(spike_mode).forward(x, thr).

    x: (batch, time, features). Returns same shape, dtype `out_dtype`
    (values are in {-1, 0, 1}, so bf16 output is lossless and halves writeback).
    `key`: jax PRNG key for the stochastic modes (SB / TRB / GS).
    `tau` is accepted for API parity; the hard-GS forward is tau-invariant.
    """
    del tau  # sign of (2x + logistic) does not depend on tau > 0
    assert spike_mode in _SPIKE_MODES, spike_mode
    B, T, N = x.shape
    thr = float(spk_threshold)
    stochastic = spike_mode in ('SB', 'TRB', 'GS')
    is_delta = spike_mode in ('D', 'SD', 'TD', 'TRD', 'D2')

    Np = _round_up(N, _LANE)   # lane-dense output (unmasked vector stores)
    cparams = pltpu.CompilerParams(
        dimension_semantics=("parallel",),
        vmem_limit_bytes=_VMEM_LIMIT)

    if is_delta:
        # keep the whole T axis in one block; pack several batch elems per step
        xp = x if Np == N else jnp.pad(x, ((0, 0), (0, 0), (0, Np - N)))
        per_batch_bytes = T * Np * 4
        bB = min(B, max(1, _TILE_BYTES // per_batch_bytes))
        if bB == B and B > 1:          # force >=2 grid steps (v7x megacore)
            bB = -(-B // 2)
        Bp = _round_up(B, bB)
        if Bp != B:
            xp = jnp.pad(xp, ((0, Bp - B), (0, 0), (0, 0)))
        kernel = functools.partial(_delta_kernel, spike_mode, thr)
        out = pl.pallas_call(
            kernel,
            out_shape=jax.ShapeDtypeStruct((Bp, T, Np), out_dtype),
            grid=(Bp // bB,),
            in_specs=[pl.BlockSpec((bB, T, Np), lambda i: (i, 0, 0))],
            out_specs=pl.BlockSpec((bB, T, Np), lambda i: (i, 0, 0)),
            compiler_params=cparams,
        )(xp)
        return out[:B, :, :N]

    # ---- non-delta modes: flatten (B, T, N) -> (B*T, N), tile over rows ----
    R = B * T
    xf = x.reshape(R, N)
    if Np != N:
        xf = jnp.pad(xf, ((0, 0), (0, Np - N)))
    tr = _pick_row_tile(R, Np)
    Rp = _round_up(R, tr)
    if Rp != R:
        xf = jnp.pad(xf, ((0, Rp - R), (0, 0)))

    if stochastic:
        if key is None:
            key = jax.random.PRNGKey(0)
        # noise generated host-side (portable; deterministic per key, independent
        # of grid sharding) and streamed in as a regular operand
        u = jax.random.uniform(key, (Rp, Np), dtype=jnp.float32)
        kernel = functools.partial(_flat_rng_kernel, spike_mode)
        args = (xf, u)
        in_specs = [pl.BlockSpec((tr, Np), lambda i: (i, 0)),
                    pl.BlockSpec((tr, Np), lambda i: (i, 0))]
    else:
        kernel = functools.partial(_flat_det_kernel, spike_mode, thr)
        args = (xf,)
        in_specs = [pl.BlockSpec((tr, Np), lambda i: (i, 0))]

    out = pl.pallas_call(
        kernel,
        out_shape=jax.ShapeDtypeStruct((Rp, Np), out_dtype),
        grid=(Rp // tr,),
        in_specs=in_specs,
        out_specs=pl.BlockSpec((tr, Np), lambda i: (i, 0)),
        compiler_params=cparams,
    )(*args)
    return out[:R, :N].reshape(B, T, N)


# --------------------------- reference & test --------------------------------

def reference_forward(x, thr, spike_mode):
    """Pure-JAX reference mirroring the PyTorch forward (deterministic modes)."""
    xn = _normalize(spike_mode, x)
    if spike_mode in ('D', 'SD', 'TD', 'TRD', 'D2'):
        prev = jnp.pad(xn, ((0, 0), (1, 0), (0, 0)))[:, :-1]
        diff = xn - prev
        if spike_mode == 'D2':
            return _heaviside(diff - thr) - _heaviside(-diff - thr)
        return _heaviside(diff - thr)
    if spike_mode in ('T', 'ST', 'TT', 'TRT'):
        return _heaviside(xn - thr)
    if spike_mode == 'T2':
        return _heaviside(xn - thr) - _heaviside(-xn - thr)
    raise ValueError(spike_mode)


if __name__ == "__main__":
    key = jax.random.PRNGKey(0)
    B, T, N = 2, 8, 128                    # batch, time steps, features
    x = jax.random.normal(key, (B, T, N), dtype=jnp.float32)
    spk_threshold = 0.1

    # deterministic spike modes: check semantics against the reference
    for mode in ('D', 'SD', 'TD', 'TRD', 'D2', 'T', 'ST', 'TT', 'TRT', 'T2'):
        out = jax.block_until_ready(spiking_forward(x, spk_threshold, mode))
        ref = reference_forward(x, spk_threshold, mode)
        assert out.shape == (B, T, N) and out.dtype == jnp.float32
        assert jnp.allclose(out, ref), f"mismatch for mode {mode}"

    # non-lane-aligned shape: exercises row/lane padding in both paths
    x2 = jax.random.normal(jax.random.PRNGKey(1), (3, 10, 72), dtype=jnp.float32)
    for mode in ('TD', 'D2', 'T2'):
        out = jax.block_until_ready(spiking_forward(x2, spk_threshold, mode))
        ref = reference_forward(x2, spk_threshold, mode)
        assert out.shape == x2.shape
        assert jnp.allclose(out, ref), f"mismatch for mode {mode} (padded)"

    # stochastic spike modes (SB / TRB / GS): run and sanity-check binary output
    for mode in ('SB', 'TRB', 'GS'):
        out = jax.block_until_ready(
            spiking_forward(x, spk_threshold, mode, key=jax.random.PRNGKey(123)))
        assert out.shape == (B, T, N)
        assert bool(jnp.all((out == 0.0) | (out == 1.0))), f"non-binary for {mode}"

    print("KERNEL_OK")
</pallas_src>

<mosaic_0001>
module attributes {stable_mosaic.version = 11 : i64} {
  func.func @_delta_kernel(%arg0: i32, %arg1: memref<1x8x128xf32, #tpu.memory_space<vmem>>, %arg2: memref<1x8x128xf32, #tpu.memory_space<vmem>>) attributes {dimension_semantics = [#tpu.dimension_semantics<parallel>], iteration_bounds = array<i64: 2>, scalar_prefetch = 0 : i64, scratch_operands = 0 : i64, tpu.core_type = #tpu.core_type<tc>, window_params = [{transform_indices = @transform_0, window_bounds = array<i64: 1, 8, 128>}, {transform_indices = @transform_1, window_bounds = array<i64: 1, 8, 128>}]} {
    %c0 = arith.constant 0 : index
    %c0_0 = arith.constant 0 : index
    %c0_1 = arith.constant 0 : index
    %0 = vector.load %arg1[%c0, %c0_0, %c0_1] : memref<1x8x128xf32, #tpu.memory_space<vmem>>, vector<1x8x128xf32>
    %c1_i32 = arith.constant 1 : i32
    %1 = tpu.dynamic_rotate %0 by %c1_i32 dim 1 : vector<1x8x128xf32>, i32 -> vector<1x8x128xf32>
    %2 = tpu.iota {dimensions = array<i32: 1>} : vector<1x8x128xi32>
    %c0_i32 = arith.constant 0 : i32
    %3 = vector.broadcast %c0_i32 : i32 to vector<1x8x128xi32>
    %4 = arith.cmpi eq, %2, %3 : vector<1x8x128xi32>
    %cst = arith.constant 0.000000e+00 : f32
    %5 = vector.broadcast %cst : f32 to vector<1x8x128xf32>
    %6 = arith.select %4, %5, %1 : vector<1x8x128xi1>, vector<1x8x128xf32>
    %7 = arith.subf %0, %6 : vector<1x8x128xf32>
    %cst_2 = arith.constant 1.000000e-01 : f32
    %8 = vector.broadcast %cst_2 : f32 to vector<1x8x128xf32>
    %9 = arith.subf %7, %8 : vector<1x8x128xf32>
    %cst_3 = arith.constant 0.000000e+00 : f32
    %10 = vector.broadcast %cst_3 : f32 to vector<1x8x128xf32>
    %11 = arith.cmpf ogt, %9, %10 : vector<1x8x128xf32>
    %12 = arith.extui %11 : vector<1x8x128xi1> to vector<1x8x128xi32>
    %13 = arith.sitofp %12 : vector<1x8x128xi32> to vector<1x8x128xf32>
    %c0_4 = arith.constant 0 : index
    %c0_5 = arith.constant 0 : index
    %c0_6 = arith.constant 0 : index
    %14 = vector.load %arg2[%c0_4, %c0_5, %c0_6] : memref<1x8x128xf32, #tpu.memory_space<vmem>>, vector<1x8x128xf32>
    tpu.vector_store %arg2[%c0_4, %c0_5, %c0_6], %13 {strides = array<i32>} : memref<1x8x128xf32, #tpu.memory_space<vmem>>, vector<1x8x128xf32>,
    return
  }
  func.func @transform_0(%arg0: i32) -> (i32, i32, i32) {
    %c0_i32 = arith.constant 0 : i32
    %c0_i32_0 = arith.constant 0 : i32
    %c0_i32_1 = arith.constant 0 : i32
    return %arg0, %c0_i32, %c0_i32_0 : i32, i32, i32
  }
  func.func @transform_1(%arg0: i32) -> (i32, i32, i32) {
    %c0_i32 = arith.constant 0 : i32
    %c0_i32_0 = arith.constant 0 : i32
    %c0_i32_1 = arith.constant 0 : i32
    return %arg0, %c0_i32, %c0_i32_0 : i32, i32, i32
  }
}

</mosaic_0001>

<llo_original>
// kernel: tpu_custom_call.1
$region0: #{tpu_custom_call.1}
  #allocation0 [shape = 'u32[]', space=smem, size = 0x4, offset = 0x4, fixed_abs, tag = 'smem constant byte address 0x4 - core index']
  #allocation1 [shape = 'u32[144,128]{1,0:T(1,128)}', space=vmem, size = 0x12000, scoped, tag = 'internal scratch']
  %s0 = inlined_call_operand.hbm [shape: f32[2,8,128], index: 0, kind: input, shape index: {}]
  %s1 = inlined_call_operand.hbm [shape: f32[2,8,128], index: 1, kind: output, shape index: {}]
  %s2 = sld [smem:[#allocation0]]
  $region41: #{tpu_custom_call.1} parent=0
    _
  %s4 = ssub.s32 1, %s2
  %s5 = scalar_select 0, %s4, %s2
  $region1: #{tpu_custom_call.1} parent=0
    #allocation2 [shape = 'u8[8192]{0}', space=vmem, size = 0x2000, scoped, tag = 'input window, operand 0']
    #allocation3 [shape = 's32[2]{0}', space=sflag, size = 0x8, scoped, tag = 'scoped memory for tpu_custom_call.1']
    #allocation4 [shape = 's32[2]{0}', space=sflag, size = 0x8, scoped, tag = 'scoped memory for tpu_custom_call.1']
    #allocation5 [shape = 'u8[8192]{0}', space=vmem, size = 0x2000, scoped, tag = 'output window, operand 0']
    %6 = vsyncpa [#allocation3], 0
    %s7 = scalar_lea.sflag [#allocation3], 1
    %8 = vsyncpa %s7, 0
    %9 = vsyncpa [#allocation4], 0
    %s10 = scalar_lea.sflag [#allocation4], 1
    %11 = vsyncpa %s10, 0
    loop: start=0, step=1, limit=4
    $region2: #{tpu_custom_call.1} parent=1 // loop_pre_header
      _
    $region3: #{tpu_custom_call.1} parent=1 // loop_header
      %s13 = sphi 0, %s17
      %p14 = scmp.ge.s32.totalorder %s13, 4
      %s23 = sphi 0, %s25
      %s26 = sphi 0, %s23
      %s27 = sphi 0, %s26
      %s43 = sphi 0, %s27
      %s49 = sphi 0, %s51
      %s52 = sphi 0, %s49
      %s53 = sphi 0, %s52
      %s69 = sphi 0, %s53
    $region4: #{tpu_custom_call.1} parent=1 // loop_header_branch
      %16 = sbr.rel (%p14) target = $region8
    $region5: #{tpu_custom_call.1} parent=1 // loop_body
      %s18 = ssub.s32 %s13, 1
      %s19 = ssub.s32 %s13, 2
      %s20 = sadd.s32 %s13, 1
      %s21 = ssub.s32 %s13, %s20
      %p22 = scmp.eq.s32.totalorder %s21, 0
      %s24 = sadd.s32 %s23, 1
      %s25 = scalar_select %p22, %s23, %s24
      %p28 = pneg %p22
      %p29 = scmp.eq.s32.totalorder %s13, 1
      %p30 = por %p28, %p29
      %p31 = scmp.ne.s32.totalorder %s23, %s26
      %p32 = scmp.eq.s32.totalorder %s13, 0
      %p33 = por %p31, %p32
      %p34 = scmp.ne.s32.totalorder %s23, %s26
      %p35 = scmp.eq.s32.totalorder %s18, 1
      %p36 = por %p34, %p35
      %p37 = scmp.ne.s32.totalorder %s26, %s27
      %p38 = scmp.eq.s32.totalorder %s18, 0
      %p39 = por %p37, %p38
      %p40 = scmp.ne.s32.totalorder %s26, %s27
      %p41 = scmp.eq.s32.totalorder %s19, 1
      %p42 = por %p40, %p41
      %p44 = scmp.ne.s32.totalorder %s27, %s43
      %p45 = scmp.eq.s32.totalorder %s19, 0
      %p46 = por %p44, %p45
      %s47 = ssub.s32 %s13, %s20
      %p48 = scmp.eq.s32.totalorder %s47, 0
      %s50 = sadd.s32 %s49, 1
      %s51 = scalar_select %p48, %s49, %s50
      %p54 = pneg %p48
      %p55 = scmp.eq.s32.totalorder %s13, 1
      %p56 = por %p54, %p55
      %p57 = scmp.ne.s32.totalorder %s49, %s52
      %p58 = scmp.eq.s32.totalorder %s13, 0
      %p59 = por %p57, %p58
      %p60 = scmp.ne.s32.totalorder %s49, %s52
      %p61 = scmp.eq.s32.totalorder %s18, 1
      %p62 = por %p60, %p61
      %p63 = scmp.ne.s32.totalorder %s52, %s53
      %p64 = scmp.eq.s32.totalorder %s18, 0
      %p65 = por %p63, %p64
      %p66 = scmp.ne.s32.totalorder %s52, %s53
      %p67 = scmp.eq.s32.totalorder %s19, 1
      %p68 = por %p66, %p67
      %p70 = scmp.ne.s32.totalorder %s53, %s69
      %p71 = scmp.eq.s32.totalorder %s19, 0
      %p72 = por %p70, %p71
      %p73 = scmp.le.s32.totalorder 1, %s13
      %p74 = scmp.lt.s32.totalorder %s13, 3
      %p75 = pnand %p73, %p74
      %p76 = pneg %p75
      // Predicated region
      $region9: #{tpu_custom_call.1} parent=5 // pred_check
        _
      $region10: #{tpu_custom_call.1} parent=5 // pred_check_branch
        %78 = sbr.rel (%p75) target = $region12
      $region11: #{tpu_custom_call.1} parent=5 // pred_region
        %s79 = ssub.s32 %s13, 1
      $region12: #{tpu_custom_call.1} parent=5 // pred_fallthru
        _
      %p80 = scmp.lt.s32.totalorder %s13, 2
      // Predicated region
      $region13: #{tpu_custom_call.1} parent=5 // pred_check
        %p81 = pneg %p80
      $region14: #{tpu_custom_call.1} parent=5 // pred_check_branch
        %83 = sbr.rel (%p81) target = $region16
      $region15: #{tpu_custom_call.1} parent=5 // pred_region
        // Predicated region
        $region17: #{tpu_custom_call.1} parent=15 // pred_check
          %p84 = pneg %p33
        $region18: #{tpu_custom_call.1} parent=15 // pred_check_branch
          %86 = sbr.rel (%p84) target = $region20
        $region19: #{tpu_custom_call.1} parent=15 // pred_region
          %s87 = sand.u32 %s23, 1
          %s88 = scalar_lea.sflag [#allocation3], %s87
          %s89 = sand.u32 %s23, 1
          %s90 = smul.addr %s89, 8
          %s91 = scalar_lea.vmem [#allocation2], %s90
          %s93 = ssub.s32 128, 128
          %94 = vsyncadd %s88, %s93
          %s95 = smul.addr %s13, 128
          %s96 = scalar_lea.hbm %s0, %s95
          %s98 = sshll.u32 %s91, 4
          %s99 = int_to_ptr.vmem [resolvable:$true] %s98
          %101 = dma.hbm_to_vmem [thread:$0]  %s96, 128, %s99, %s88
        $region20: #{tpu_custom_call.1} parent=15 // pred_fallthru
          _
      $region16: #{tpu_custom_call.1} parent=5 // pred_fallthru
        _
      %p102 = scmp.le.s32.totalorder 1, %s13
      %p103 = scmp.lt.s32.totalorder %s13, 3
      %p104 = pnand %p102, %p103
      %p105 = pneg %p104
      // Predicated region
      $region21: #{tpu_custom_call.1} parent=5 // pred_check
        _
      $region22: #{tpu_custom_call.1} parent=5 // pred_check_branch
        %107 = sbr.rel (%p104) target = $region24
      $region23: #{tpu_custom_call.1} parent=5 // pred_region
        %s108 = ssub.s32 %s13, 1
        %s109 = sand.u32 %s26, 1
        %s110 = scalar_lea.sflag [#allocation3], %s109
        %s111 = sand.u32 %s26, 1
        %s112 = smul.addr %s111, 8
        %s113 = scalar_lea.vmem [#allocation2], %s112
        // Predicated region
        $region25: #{tpu_custom_call.1} parent=23 // pred_check
          %p114 = pneg %p39
        $region26: #{tpu_custom_call.1} parent=23 // pred_check_branch
          %116 = sbr.rel (%p114) target = $region28
        $region27: #{tpu_custom_call.1} parent=23 // pred_region
          %117 = dma.done %s110, 128
        $region28: #{tpu_custom_call.1} parent=23 // pred_fallthru
          _
        %s118 = sand.u32 %s26, 1
        %s119 = scalar_lea.sflag [#allocation3], %s118
        %s120 = sand.u32 %s26, 1
        %s121 = smul.addr %s120, 8
        %s122 = scalar_lea.vmem [#allocation2], %s121
        %p123 = pneg %p39
        %p124 = pneg %p36
        %p125 = pneg %p65
        %p126 = pneg %p62
        %s127 = sand.u32 %s52, 1
        %s128 = scalar_lea.sflag [#allocation4], %s127
        %s129 = sand.u32 %s52, 1
        %s130 = smul.addr %s129, 8
        %s131 = scalar_lea.vmem [#allocation5], %s130
        %v132 = vld [vmem:[%s113] sm:$0xff]
        %v133 = vrot.slane %v132, 7
        %v134 = vlaneseq
        %v135 = vshrl.u32 %v134, 7
        %vm136 = vcmp.eq.s32.totalorder %v135, 0
        %v137 = vsel %vm136, 0.0, %v133
        %v138 = vsub.f32 %v132, %v137
        %v139 = vsub.f32 %v138, 0.1
        %vm140 = vcmp.gt.f32.partialorder %v139, 0.0
        %v141 = vsel %vm140, 1, 0
        %v142 = vcvt.s32.f32 %v141
        %143 = vst [vmem:[%s131] sm:$0xff] %v142
        %s144 = sand.u32 %s52, 1
        %s145 = scalar_lea.sflag [#allocation4], %s144
        %s146 = sand.u32 %s52, 1
        %s147 = smul.addr %s146, 8
        %s148 = scalar_lea.vmem [#allocation5], %s147
        // Predicated region
        $region29: #{tpu_custom_call.1} parent=23 // pred_check
          %p149 = pneg %p62
        $region30: #{tpu_custom_call.1} parent=23 // pred_check_branch
          %151 = sbr.rel (%p149) target = $region32
        $region31: #{tpu_custom_call.1} parent=23 // pred_region
          %s153 = ssub.s32 128, 128
          %154 = vsyncadd %s145, %s153
          %s155 = smul.addr %s18, 128
          %s156 = scalar_lea.hbm %s1, %s155
          %s158 = sshll.u32 %s148, 4
          %s159 = int_to_ptr.vmem [resolvable:$true] %s158
          %161 = dma.vmem_to_hbm [thread:$0]  %s159, 128, %s156, %s145
        $region32: #{tpu_custom_call.1} parent=23 // pred_fallthru
          _
      $region24: #{tpu_custom_call.1} parent=5 // pred_fallthru
        _
      %p162 = scmp.le.s32.totalorder 2, %s13
      // Predicated region
      $region33: #{tpu_custom_call.1} parent=5 // pred_check
        %p163 = pneg %p162
      $region34: #{tpu_custom_call.1} parent=5 // pred_check_branch
        %165 = sbr.rel (%p163) target = $region36
      $region35: #{tpu_custom_call.1} parent=5 // pred_region
        %s166 = ssub.s32 %s13, 2
        // Predicated region
        $region37: #{tpu_custom_call.1} parent=35 // pred_check
          %p167 = pneg %p68
        $region38: #{tpu_custom_call.1} parent=35 // pred_check_branch
          %169 = sbr.rel (%p167) target = $region40
        $region39: #{tpu_custom_call.1} parent=35 // pred_region
          %s170 = sand.u32 %s53, 1
          %s171 = scalar_lea.sflag [#allocation4], %s170
          %s172 = sand.u32 %s53, 1
          %s173 = smul.addr %s172, 8
          %s174 = scalar_lea.vmem [#allocation5], %s173
          %175 = dma.done %s171, 128
        $region40: #{tpu_custom_call.1} parent=35 // pred_fallthru
          _
      $region36: #{tpu_custom_call.1} parent=5 // pred_fallthru
        _
    $region6: #{tpu_custom_call.1} parent=1 // loop_footer
      %s17 = sadd.s32 1, %s13
    $region7: #{tpu_custom_call.1} parent=1 // loop_footer_branch
      %12 = sbr.rel target = $region3
    $region8: #{tpu_custom_call.1} parent=1 // loop_exit
      _
    %176 = vsyncpa [#allocation3], 1
    %s177 = scalar_lea.sflag [#allocation3], 1
    %178 = vsyncpa %s177, 1
    %179 = vsyncpa [#allocation4], 1
    %s180 = scalar_lea.sflag [#allocation4], 1
    %181 = vsyncpa %s180, 1

</llo_original>
